<compile_context>
chip_gen: v7x
topology: tpu7x:2x2x1
jax: 0.10.0
libtpu: 0.0.40
codegen_flags: <defaults>
</compile_context>

<pallas_src>
import jax
import jax.numpy as jnp
import numpy as np
from jax.experimental import pallas as pl
from jax.experimental.pallas import tpu as pltpu

# ---------------- fixed module "params" (deterministic, synthetic) ----------
WEIGHT = 1.0
PATCH_SIZE = 4
VOCABULARY_SIZE = 8                 # module does +1 -> 9 classes
NUM_CLASSES = VOCABULARY_SIZE + 1
USE_BG = False
SIM_REGULARIZATION = True

MAX_TILE_PX = 8192                  # pixels per grid step (lane axis)


def _pick_tile_px(hw, max_tile=MAX_TILE_PX):
    """Largest multiple of 128 that divides hw and is <= max_tile."""
    assert hw % 128 == 0, "H*W per sample must be a multiple of 128"
    best, cand, limit = 128, 128, min(hw, max_tile)
    while cand <= limit:
        if hw % cand == 0:
            best = cand
        cand += 128
    return best


# ---------------- Pallas kernel ----------------------------------------------
def _rec_loss_kernel(logits_ref, target_ref, mask_ref, voca_ref,
                     loss_out_ref, mask_out_ref, reg_out_ref,
                     acc_loss, acc_mask):
    """Masked CE over one (n, pixel-tile) block; fused sim-reg on last step.

    logits_ref: (1, C, TPX)  classes on sublanes, pixels lane-dense
    target_ref: (1, 1, TPX)  int32
    mask_ref:   (1, 1, TPX)  f32
    voca_ref:   (V, D)       resident (constant index_map)
    outputs:    per-n (1, 1, 1) partial sums / reg value
    """
    j = pl.program_id(1)
    last_j = pl.num_programs(1) - 1

    @pl.when(j == 0)
    def _():
        acc_loss[...] = jnp.zeros_like(acc_loss)
        acc_mask[...] = jnp.zeros_like(acc_mask)

    logits = logits_ref[0].astype(jnp.float32)          # (C, TPX)
    tgt = target_ref[0]                                 # (1, TPX) int32
    m = mask_ref[0].astype(jnp.float32)                 # (1, TPX)

    # numerically-stable log-sum-exp over the class axis (9 sublane rows)
    mx = jnp.max(logits, axis=0, keepdims=True)                       # (1, TPX)
    lse = jnp.log(jnp.sum(jnp.exp(logits - mx), axis=0, keepdims=True)) + mx

    # target-class logit via one-hot compare (no gather/scatter)
    cls = jax.lax.broadcasted_iota(jnp.int32, logits.shape, 0)        # (C, TPX)
    tgt_logit = jnp.sum(jnp.where(cls == tgt, logits, 0.0),
                        axis=0, keepdims=True)                        # (1, TPX)

    ce = lse - tgt_logit                                              # (1, TPX)

    # lane-dense partial-sum accumulation (pure VPU adds, no per-step XLU)
    acc_loss[...] = acc_loss[...] + ce * m
    acc_mask[...] = acc_mask[...] + m

    @pl.when(j == last_j)
    def _():
        # single final reduction + tiny store, once per n
        loss_out_ref[...] = jnp.sum(acc_loss[...]).reshape(1, 1, 1)
        mask_out_ref[...] = jnp.sum(acc_mask[...]).reshape(1, 1, 1)

        # fused vocabulary-similarity regularizer (tiny V x V gram)
        v = voca_ref[...].astype(jnp.float32)                         # (V, D)
        inv_norm = jax.lax.rsqrt(
            jnp.maximum(jnp.sum(v * v, axis=-1, keepdims=True), 1e-24))
        vn = v * inv_norm                                # F.normalize(p=2, dim=1)
        sim = 1.0 + jnp.einsum('nd,md->nm', vn, vn,
                               preferred_element_type=jnp.float32)    # (V, V)
        nv = sim.shape[0]
        row = jax.lax.broadcasted_iota(jnp.int32, sim.shape, 0)
        col = jax.lax.broadcasted_iota(jnp.int32, sim.shape, 1)
        upper = (col > row).astype(jnp.float32)
        reg_out_ref[...] = (jnp.sum(sim * upper)
                            / (nv * (nv - 1) / 2.0)).reshape(1, 1, 1)


# ---------------- wrapper -----------------------------------------------------
def _rec_loss_pallas(logits_nchw_flat, target_flat, mask_flat, voca):
    """logits: (N, C, HW); target/mask: (N, 1, HW); voca: (V, D)."""
    N, C, HW = logits_nchw_flat.shape
    V, D = voca.shape
    tile_px = _pick_tile_px(HW)
    grid = (N, HW // tile_px)

    cost = pl.CostEstimate(
        flops=int(6 * N * C * HW),
        transcendentals=int(N * HW * (C + 1)),     # exp per class + log per px
        bytes_accessed=int(4 * N * HW * (C + 2)))

    loss_p, mask_p, reg_p = pl.pallas_call(
        _rec_loss_kernel,
        out_shape=(jax.ShapeDtypeStruct((N, 1, 1), jnp.float32),
                   jax.ShapeDtypeStruct((N, 1, 1), jnp.float32),
                   jax.ShapeDtypeStruct((N, 1, 1), jnp.float32)),
        grid_spec=pltpu.PrefetchScalarGridSpec(
            num_scalar_prefetch=0,
            grid=grid,
            in_specs=[
                pl.BlockSpec((1, C, tile_px), lambda n, j: (n, 0, j)),
                pl.BlockSpec((1, 1, tile_px), lambda n, j: (n, 0, j)),
                pl.BlockSpec((1, 1, tile_px), lambda n, j: (n, 0, j)),
                pl.BlockSpec((V, D), lambda n, j: (0, 0)),
            ],
            out_specs=(
                pl.BlockSpec((1, 1, 1), lambda n, j: (n, 0, 0)),
                pl.BlockSpec((1, 1, 1), lambda n, j: (n, 0, 0)),
                pl.BlockSpec((1, 1, 1), lambda n, j: (n, 0, 0)),
            ),
            scratch_shapes=[pltpu.VMEM((1, tile_px), jnp.float32),
                            pltpu.VMEM((1, tile_px), jnp.float32)]),
        compiler_params=pltpu.CompilerParams(
            # batch axis parallel -> megacore split on v7x; pixel axis is the
            # accumulation axis -> arbitrary.
            dimension_semantics=("parallel", "arbitrary")),
        cost_estimate=cost,
    )(logits_nchw_flat, target_flat, mask_flat, voca)

    return jnp.sum(loss_p), jnp.sum(mask_p), reg_p[0, 0, 0]


def unpatchify(x, p):
    # x: (N, L, p*p) -> (N, h*p, w*p) with w = sqrt(L/2), h = 2*w
    N, L, _ = x.shape
    w = int((L * 0.5) ** 0.5)
    h = w * 2
    assert h * w == L
    x = x.reshape(N, h, w, p, p)
    x = jnp.einsum('nhwpq->nhpwq', x)
    return x.reshape(N, h * p, w * p)


def rec_loss(pred, target, mask, valid, vocabulary_token=None):
    """Forward pass of RecLoss (default masked-mean path + sim regularizer)."""
    N, C, H, W = pred.shape
    b, hm, wm = mask.shape

    # mask (b, hm, wm) -> pixel-level (N, H, W) via patch-repeat + unpatchify
    m = mask.reshape(b, hm * wm)
    m = jnp.repeat(m[:, :, None], PATCH_SIZE ** 2, axis=2)
    m = unpatchify(m, PATCH_SIZE)                       # (N, H, W)
    if not USE_BG:
        m = m * valid

    # native NCHW layout: zero-copy reshape, classes on sublanes, px on lanes
    HW = H * W
    logits = pred.reshape(N, C, HW)
    tgt = target.reshape(N, 1, HW).astype(jnp.int32)
    m_flat = m.reshape(N, 1, HW).astype(jnp.float32)

    loss_sum, mask_sum, loss_reg = _rec_loss_pallas(
        logits, tgt, m_flat, vocabulary_token)

    # NOTE: matches reference semantics (mask_sum == 0 -> NaN, same as torch)
    total = (loss_sum / mask_sum) * WEIGHT
    if SIM_REGULARIZATION:
        total = total + loss_reg * 0.05
    return total


# ---------------- pure-JAX reference (for verification) ---------------------
def rec_loss_ref(pred, target, mask, valid, vocabulary_token):
    N, C, H, W = pred.shape
    m = mask.reshape(N, -1)
    m = jnp.repeat(m[:, :, None], PATCH_SIZE ** 2, axis=2)
    m = unpatchify(m, PATCH_SIZE)
    if not USE_BG:
        m = m * valid
    logp = jax.nn.log_softmax(pred, axis=1)
    ce = -jnp.take_along_axis(logp, target[:, None].astype(jnp.int32), axis=1)[:, 0]
    total = (ce * m).sum() / m.sum() * WEIGHT
    if SIM_REGULARIZATION:
        vn = vocabulary_token / jnp.maximum(
            jnp.linalg.norm(vocabulary_token, axis=1, keepdims=True), 1e-12)
        sim = 1.0 + vn @ vn.T
        num = vn.shape[0]
        iu = jnp.triu(jnp.ones((num, num), bool), k=1)
        loss_reg = jnp.sum(jnp.where(iu, sim, 0.0)) / jnp.sum(iu)
        total = total + 0.05 * loss_reg
    return total


# ---------------- demo -------------------------------------------------------
if __name__ == "__main__":
    key = jax.random.PRNGKey(0)
    k1, k2, k3, k4, k5 = jax.random.split(key, 5)

    N = 2
    hm, wm = 8, 4                              # mask grid; L = 32 = 2 * 4**2
    H, W = hm * PATCH_SIZE, wm * PATCH_SIZE    # 32, 16 -> 512 px / sample
    C = NUM_CLASSES                            # 9

    pred = jax.random.normal(k1, (N, C, H, W), dtype=jnp.float32)
    target = jax.random.randint(k2, (N, H, W), 0, C)
    mask = jax.random.bernoulli(k3, 0.5, (N, hm, wm)).astype(jnp.float32)
    valid = jax.random.bernoulli(k4, 0.8, (N, H, W)).astype(jnp.float32)
    vocabulary_token = jax.random.normal(k5, (16, 32), dtype=jnp.float32)

    out = jax.block_until_ready(
        rec_loss(pred, target, mask, valid, vocabulary_token))

    ref = jax.block_until_ready(
        rec_loss_ref(pred, target, mask, valid, vocabulary_token))
    np.testing.assert_allclose(np.asarray(out), np.asarray(ref),
                               rtol=1e-4, atol=1e-4)

    print("KERNEL_OK")
</pallas_src>

<mosaic_0001>
module attributes {stable_mosaic.version = 11 : i64} {
  func.func @_rec_loss_kernel(%arg0: i32, %arg1: i32, %arg2: memref<1x9x512xf32, #tpu.memory_space<vmem>>, %arg3: memref<1x1x512xi32, #tpu.memory_space<vmem>>, %arg4: memref<1x1x512xf32, #tpu.memory_space<vmem>>, %arg5: memref<16x32xf32, #tpu.memory_space<vmem>>, %arg6: memref<1x1x1xf32, #tpu.memory_space<vmem>>, %arg7: memref<1x1x1xf32, #tpu.memory_space<vmem>>, %arg8: memref<1x1x1xf32, #tpu.memory_space<vmem>>, %arg9: memref<1x512xf32, #tpu.memory_space<vmem>>, %arg10: memref<1x512xf32, #tpu.memory_space<vmem>>) attributes {dimension_semantics = [#tpu.dimension_semantics<parallel>, #tpu.dimension_semantics<arbitrary>], iteration_bounds = array<i64: 2, 1>, scalar_prefetch = 0 : i64, scratch_operands = 2 : i64, tpu.core_type = #tpu.core_type<tc>, window_params = [{transform_indices = @transform_0, window_bounds = array<i64: 1, 9, 512>}, {transform_indices = @transform_1, window_bounds = array<i64: 1, 1, 512>}, {transform_indices = @transform_2, window_bounds = array<i64: 1, 1, 512>}, {pipeline_mode = #tpu.pipeline_mode<synchronous>, transform_indices = @transform_3, window_bounds = array<i64: 16, 32>}, {transform_indices = @transform_4, window_bounds = array<i64: 1, 1, 1>}, {transform_indices = @transform_5, window_bounds = array<i64: 1, 1, 1>}, {transform_indices = @transform_6, window_bounds = array<i64: 1, 1, 1>}]} {
    %c0_i32 = arith.constant 0 : i32
    %0 = arith.cmpi eq, %arg1, %c0_i32 : i32
    %1 = arith.extui %0 : i1 to i32
    %c0_i32_0 = arith.constant 0 : i32
    %2 = arith.cmpi ne, %1, %c0_i32_0 : i32
    scf.if %2 {
      %cst_22 = arith.constant 0.000000e+00 : f32
      %36 = vector.broadcast %cst_22 : f32 to vector<1x512xf32>
      %c0_23 = arith.constant 0 : index
      %c0_24 = arith.constant 0 : index
      %37 = vector.load %arg9[%c0_23, %c0_24] : memref<1x512xf32, #tpu.memory_space<vmem>>, vector<1x512xf32>
      tpu.vector_store %arg9[%c0_23, %c0_24], %36 {strides = array<i32>} : memref<1x512xf32, #tpu.memory_space<vmem>>, vector<1x512xf32>,
      %cst_25 = arith.constant 0.000000e+00 : f32
      %38 = vector.broadcast %cst_25 : f32 to vector<1x512xf32>
      %c0_26 = arith.constant 0 : index
      %c0_27 = arith.constant 0 : index
      %39 = vector.load %arg10[%c0_26, %c0_27] : memref<1x512xf32, #tpu.memory_space<vmem>>, vector<1x512xf32>
      tpu.vector_store %arg10[%c0_26, %c0_27], %38 {strides = array<i32>} : memref<1x512xf32, #tpu.memory_space<vmem>>, vector<1x512xf32>,
    } else {
    }
    %c0 = arith.constant 0 : index
    %c0_1 = arith.constant 0 : index
    %c0_2 = arith.constant 0 : index
    %3 = vector.load %arg2[%c0, %c0_1, %c0_2] : memref<1x9x512xf32, #tpu.memory_space<vmem>>, vector<1x9x512xf32>
    %4 = vector.shape_cast %3 : vector<1x9x512xf32> to vector<9x512xf32>
    %c0_3 = arith.constant 0 : index
    %c0_4 = arith.constant 0 : index
    %c0_5 = arith.constant 0 : index
    %5 = vector.load %arg3[%c0_3, %c0_4, %c0_5] : memref<1x1x512xi32, #tpu.memory_space<vmem>>, vector<1x1x512xi32>
    %6 = vector.shape_cast %5 : vector<1x1x512xi32> to vector<1x512xi32>
    %c0_6 = arith.constant 0 : index
    %c0_7 = arith.constant 0 : index
    %c0_8 = arith.constant 0 : index
    %7 = vector.load %arg4[%c0_6, %c0_7, %c0_8] : memref<1x1x512xf32, #tpu.memory_space<vmem>>, vector<1x1x512xf32>
    %8 = vector.shape_cast %7 : vector<1x1x512xf32> to vector<1x512xf32>
    %cst = arith.constant dense<0xFF800000> : vector<512xf32>
    %9 = vector.multi_reduction <maximumf>, %4, %cst [0] : vector<9x512xf32> to vector<512xf32>
    %10 = vector.shape_cast %9 : vector<512xf32> to vector<1x512xf32>
    %11 = vector.broadcast %10 : vector<1x512xf32> to vector<9x512xf32>
    %12 = arith.subf %4, %11 : vector<9x512xf32>
    %13 = math.exp %12 : vector<9x512xf32>
    %cst_9 = arith.constant dense<0.000000e+00> : vector<512xf32>
    %14 = vector.multi_reduction <add>, %13, %cst_9 [0] : vector<9x512xf32> to vector<512xf32>
    %15 = vector.shape_cast %14 : vector<512xf32> to vector<1x512xf32>
    %16 = math.log %15 : vector<1x512xf32>
    %17 = arith.addf %16, %10 : vector<1x512xf32>
    %18 = tpu.iota {dimensions = array<i32: 0>} : vector<9x512xi32>
    %19 = vector.broadcast %6 : vector<1x512xi32> to vector<9x512xi32>
    %20 = arith.cmpi eq, %18, %19 : vector<9x512xi32>
    %cst_10 = arith.constant 0.000000e+00 : f32
    %21 = vector.broadcast %cst_10 : f32 to vector<9x512xf32>
    %22 = arith.select %20, %4, %21 : vector<9x512xi1>, vector<9x512xf32>
    %cst_11 = arith.constant dense<0.000000e+00> : vector<512xf32>
    %23 = vector.multi_reduction <add>, %22, %cst_11 [0] : vector<9x512xf32> to vector<512xf32>
    %24 = vector.shape_cast %23 : vector<512xf32> to vector<1x512xf32>
    %25 = arith.subf %17, %24 : vector<1x512xf32>
    %c0_12 = arith.constant 0 : index
    %c0_13 = arith.constant 0 : index
    %26 = vector.load %arg9[%c0_12, %c0_13] : memref<1x512xf32, #tpu.memory_space<vmem>>, vector<1x512xf32>
    %27 = arith.mulf %25, %8 : vector<1x512xf32>
    %28 = arith.addf %26, %27 : vector<1x512xf32>
    %c0_14 = arith.constant 0 : index
    %c0_15 = arith.constant 0 : index
    %29 = vector.load %arg9[%c0_14, %c0_15] : memref<1x512xf32, #tpu.memory_space<vmem>>, vector<1x512xf32>
    tpu.vector_store %arg9[%c0_14, %c0_15], %28 {strides = array<i32>} : memref<1x512xf32, #tpu.memory_space<vmem>>, vector<1x512xf32>,
    %c0_16 = arith.constant 0 : index
    %c0_17 = arith.constant 0 : index
    %30 = vector.load %arg10[%c0_16, %c0_17] : memref<1x512xf32, #tpu.memory_space<vmem>>, vector<1x512xf32>
    %31 = arith.addf %30, %8 : vector<1x512xf32>
    %c0_18 = arith.constant 0 : index
    %c0_19 = arith.constant 0 : index
    %32 = vector.load %arg10[%c0_18, %c0_19] : memref<1x512xf32, #tpu.memory_space<vmem>>, vector<1x512xf32>
    tpu.vector_store %arg10[%c0_18, %c0_19], %31 {strides = array<i32>} : memref<1x512xf32, #tpu.memory_space<vmem>>, vector<1x512xf32>,
    %c0_i32_20 = arith.constant 0 : i32
    %33 = arith.cmpi eq, %arg1, %c0_i32_20 : i32
    %34 = arith.extui %33 : i1 to i32
    %c0_i32_21 = arith.constant 0 : i32
    %35 = arith.cmpi ne, %34, %c0_i32_21 : i32
    scf.if %35 {
      %c0_22 = arith.constant 0 : index
      %c0_23 = arith.constant 0 : index
      %36 = vector.load %arg9[%c0_22, %c0_23] : memref<1x512xf32, #tpu.memory_space<vmem>>, vector<1x512xf32>
      %37 = vector.shape_cast %36 : vector<1x512xf32> to vector<1x1x512xf32>
      %cst_24 = arith.constant dense<0.000000e+00> : vector<1xf32>
      %38 = vector.multi_reduction <add>, %37, %cst_24 [1, 2] : vector<1x1x512xf32> to vector<1xf32>
      %39 = vector.shape_cast %38 : vector<1xf32> to vector<1x1x1xf32>
      %40 = vector.extract %39[0, 0, 0] : f32 from vector<1x1x1xf32>
      %41 = vector.broadcast %40 : f32 to vector<1x1x1xf32>
      %c0_25 = arith.constant 0 : index
      %c0_26 = arith.constant 0 : index
      %c0_27 = arith.constant 0 : index
      %42 = vector.load %arg6[%c0_25, %c0_26, %c0_27] : memref<1x1x1xf32, #tpu.memory_space<vmem>>, vector<1x1x1xf32>
      tpu.vector_store %arg6[%c0_25, %c0_26, %c0_27], %41 {strides = array<i32>} : memref<1x1x1xf32, #tpu.memory_space<vmem>>, vector<1x1x1xf32>,
      %c0_28 = arith.constant 0 : index
      %c0_29 = arith.constant 0 : index
      %43 = vector.load %arg10[%c0_28, %c0_29] : memref<1x512xf32, #tpu.memory_space<vmem>>, vector<1x512xf32>
      %44 = vector.shape_cast %43 : vector<1x512xf32> to vector<1x1x512xf32>
      %cst_30 = arith.constant dense<0.000000e+00> : vector<1xf32>
      %45 = vector.multi_reduction <add>, %44, %cst_30 [1, 2] : vector<1x1x512xf32> to vector<1xf32>
      %46 = vector.shape_cast %45 : vector<1xf32> to vector<1x1x1xf32>
      %47 = vector.extract %46[0, 0, 0] : f32 from vector<1x1x1xf32>
      %48 = vector.broadcast %47 : f32 to vector<1x1x1xf32>
      %c0_31 = arith.constant 0 : index
      %c0_32 = arith.constant 0 : index
      %c0_33 = arith.constant 0 : index
      %49 = vector.load %arg7[%c0_31, %c0_32, %c0_33] : memref<1x1x1xf32, #tpu.memory_space<vmem>>, vector<1x1x1xf32>
      tpu.vector_store %arg7[%c0_31, %c0_32, %c0_33], %48 {strides = array<i32>} : memref<1x1x1xf32, #tpu.memory_space<vmem>>, vector<1x1x1xf32>,
      %c0_34 = arith.constant 0 : index
      %c0_35 = arith.constant 0 : index
      %50 = vector.load %arg5[%c0_34, %c0_35] : memref<16x32xf32, #tpu.memory_space<vmem>>, vector<16x32xf32>
      %51 = arith.mulf %50, %50 : vector<16x32xf32>
      %cst_36 = arith.constant dense<0.000000e+00> : vector<16xf32>
      %52 = vector.multi_reduction <add>, %51, %cst_36 [1] : vector<16x32xf32> to vector<16xf32>
      %53 = vector.shape_cast %52 : vector<16xf32> to vector<16x1xf32>
      %cst_37 = arith.constant 1.000000e-24 : f32
      %54 = vector.broadcast %cst_37 : f32 to vector<16x1xf32>
      %55 = arith.maximumf %53, %54 : vector<16x1xf32>
      %56 = math.rsqrt %55 : vector<16x1xf32>
      %57 = vector.broadcast %56 : vector<16x1xf32> to vector<16x32xf32>
      %58 = arith.mulf %50, %57 : vector<16x32xf32>
      "tpu.trace_start"() <{level = 10 : i32, message = "nd,md->nm"}> : () -> ()
      %cst_38 = arith.constant dense<0.000000e+00> : vector<16x16xf32>
      %59 = tpu.matmul %58, %58, %cst_38 {dimension_numbers = #tpu.dot_dimension_numbers<[1], [1], [0], [0], [0, 0, 1, 0], [], []>} : vector<16x32xf32>, vector<16x32xf32>, vector<16x16xf32> -> vector<16x16xf32>
      "tpu.trace_stop"() : () -> ()
      %cst_39 = arith.constant 1.000000e+00 : f32
      %60 = vector.broadcast %cst_39 : f32 to vector<16x16xf32>
      %61 = arith.addf %60, %59 : vector<16x16xf32>
      %62 = tpu.iota {dimensions = array<i32: 0>} : vector<16x16xi32>
      %63 = tpu.iota {dimensions = array<i32: 1>} : vector<16x16xi32>
      %64 = arith.cmpi sgt, %63, %62 : vector<16x16xi32>
      %65 = arith.extui %64 : vector<16x16xi1> to vector<16x16xi32>
      %66 = arith.sitofp %65 : vector<16x16xi32> to vector<16x16xf32>
      %67 = arith.mulf %61, %66 : vector<16x16xf32>
      %68 = vector.shape_cast %67 : vector<16x16xf32> to vector<1x16x16xf32>
      %cst_40 = arith.constant dense<0.000000e+00> : vector<1xf32>
      %69 = vector.multi_reduction <add>, %68, %cst_40 [1, 2] : vector<1x16x16xf32> to vector<1xf32>
      %70 = vector.shape_cast %69 : vector<1xf32> to vector<1x1x1xf32>
      %71 = vector.extract %70[0, 0, 0] : f32 from vector<1x1x1xf32>
      %cst_41 = arith.constant 1.200000e+02 : f32
      %72 = arith.divf %71, %cst_41 : f32
      %73 = vector.broadcast %72 : f32 to vector<1x1x1xf32>
      %c0_42 = arith.constant 0 : index
      %c0_43 = arith.constant 0 : index
      %c0_44 = arith.constant 0 : index
      %74 = vector.load %arg8[%c0_42, %c0_43, %c0_44] : memref<1x1x1xf32, #tpu.memory_space<vmem>>, vector<1x1x1xf32>
      tpu.vector_store %arg8[%c0_42, %c0_43, %c0_44], %73 {strides = array<i32>} : memref<1x1x1xf32, #tpu.memory_space<vmem>>, vector<1x1x1xf32>,
    } else {
    }
    return
  }
  func.func @transform_0(%arg0: i32, %arg1: i32) -> (i32, i32, i32) {
    %c0_i32 = arith.constant 0 : i32
    %c0_i32_0 = arith.constant 0 : i32
    return %arg0, %c0_i32, %arg1 : i32, i32, i32
  }
  func.func @transform_1(%arg0: i32, %arg1: i32) -> (i32, i32, i32) {
    %c0_i32 = arith.constant 0 : i32
    %c0_i32_0 = arith.constant 0 : i32
    return %arg0, %c0_i32, %arg1 : i32, i32, i32
  }
  func.func @transform_2(%arg0: i32, %arg1: i32) -> (i32, i32, i32) {
    %c0_i32 = arith.constant 0 : i32
    %c0_i32_0 = arith.constant 0 : i32
    return %arg0, %c0_i32, %arg1 : i32, i32, i32
  }
  func.func @transform_3(%arg0: i32, %arg1: i32) -> (i32, i32) {
    %c0_i32 = arith.constant 0 : i32
    %c0_i32_0 = arith.constant 0 : i32
    %c0_i32_1 = arith.constant 0 : i32
    return %c0_i32, %c0_i32_0 : i32, i32
  }
  func.func @transform_4(%arg0: i32, %arg1: i32) -> (i32, i32, i32) {
    %c0_i32 = arith.constant 0 : i32
    %c0_i32_0 = arith.constant 0 : i32
    %c0_i32_1 = arith.constant 0 : i32
    return %arg0, %c0_i32, %c0_i32_0 : i32, i32, i32
  }
  func.func @transform_5(%arg0: i32, %arg1: i32) -> (i32, i32, i32) {
    %c0_i32 = arith.constant 0 : i32
    %c0_i32_0 = arith.constant 0 : i32
    %c0_i32_1 = arith.constant 0 : i32
    return %arg0, %c0_i32, %c0_i32_0 : i32, i32, i32
  }
  func.func @transform_6(%arg0: i32, %arg1: i32) -> (i32, i32, i32) {
    %c0_i32 = arith.constant 0 : i32
    %c0_i32_0 = arith.constant 0 : i32
    %c0_i32_1 = arith.constant 0 : i32
    return %arg0, %c0_i32, %c0_i32_0 : i32, i32, i32
  }
}

</mosaic_0001>

<llo_original>
// kernel: tpu_custom_call.1
$region0: #{tpu_custom_call.1}
  #allocation0 [shape = 'u32[]', space=smem, size = 0x4, offset = 0x4, fixed_abs, tag = 'smem constant byte address 0x4 - core index']
  #allocation1 [shape = 'u32[144,128]{1,0:T(1,128)}', space=vmem, size = 0x12000, scoped, tag = 'internal scratch']
  #allocation2 [shape = 'f32[1,512]{1,0:T(1,128)}', space=vmem, size = 0x800, scoped, tag = 'scratch operand']
  #allocation3 [shape = 'f32[1,512]{1,0:T(1,128)}', space=vmem, size = 0x800, scoped, tag = 'scratch operand']
  %s0 = inlined_call_operand.vmem [shape: f32[2,9,512], index: 0, kind: input, shape index: {}]
  %s1 = inlined_call_operand.vmem [shape: s32[2,1,512], index: 1, kind: input, shape index: {}]
  %s2 = inlined_call_operand.vmem [shape: f32[2,1,512], index: 2, kind: input, shape index: {}]
  %s3 = inlined_call_operand.vmem [shape: f32[16,32], index: 3, kind: input, shape index: {}]
  %s4 = inlined_call_operand.vmem [shape: f32[2,1,1], index: 4, kind: output, shape index: {0}]
  %s5 = inlined_call_operand.vmem [shape: f32[2,1,1], index: 5, kind: output, shape index: {1}]
  %s6 = inlined_call_operand.vmem [shape: f32[2,1,1], index: 6, kind: output, shape index: {2}]
  %7 = xla_tuple %s4, %s5, %s6
  %s8 = sld [smem:[#allocation0]]
  $region73: #{tpu_custom_call.1} parent=0
    _
  %s10 = ssub.s32 1, %s8
  %s11 = scalar_select 0, %s10, %s8
  loop: start=0, step=1, limit=4
  $region2: #{tpu_custom_call.1} parent=0 // loop_pre_header
    _
  $region3: #{tpu_custom_call.1} parent=0 // loop_header
    %s13 = sphi 0, %s17
    %p14 = scmp.ge.s32.totalorder %s13, 4
    %s20 = sphi 0, %s32
    %s21 = sphi 0, %s28
    %s22 = sphi 0, %s20
    %s23 = sphi 0, %s21
    %s24 = sphi 0, %s22
    %s25 = sphi 0, %s23
    %s37 = sphi 0, %s39
    %s40 = sphi 0, %s37
    %s41 = sphi 0, %s40
    %s57 = sphi 0, %s41
    %s65 = sphi 0, %s67
    %s68 = sphi 0, %s65
    %s69 = sphi 0, %s68
    %s85 = sphi 0, %s69
    %s93 = sphi 0, %s95
    %s96 = sphi 0, %s93
    %s97 = sphi 0, %s96
    %s113 = sphi 0, %s97
    %s117 = sphi 0, %s117
    %s119 = sphi 0, %s117
    %s120 = sphi 0, %s119
    %s134 = sphi 0, %s120
    %s140 = sphi 0, %s142
    %s143 = sphi 0, %s140
    %s144 = sphi 0, %s143
    %s160 = sphi 0, %s144
    %s166 = sphi 0, %s168
    %s169 = sphi 0, %s166
    %s170 = sphi 0, %s169
    %s186 = sphi 0, %s170
    %s192 = sphi 0, %s194
    %s195 = sphi 0, %s192
    %s196 = sphi 0, %s195
    %s212 = sphi 0, %s196
  $region4: #{tpu_custom_call.1} parent=0 // loop_header_branch
    %16 = sbr.rel (%p14) target = $region8
  $region5: #{tpu_custom_call.1} parent=0 // loop_body
    %s18 = ssub.s32 %s13, 1
    %s19 = ssub.s32 %s13, 2
    %s26 = sadd.s32 1, %s21
    %p27 = scmp.ge.s32.totalorder %s26, 1
    %s28 = scalar_select %p27, 0, %s26
    %s29 = sadd.s32 1, %s20
    %s30 = scalar_select %p27, %s29, %s20
    %p31 = scmp.ge.s32.totalorder %s30, 2
    %s32 = scalar_select %p31, 0, %s30
    %s33 = ssub.s32 %s20, %s32
    %s34 = ssub.s32 %s21, %s28
    %s35 = sor.u32 %s33, %s34
    %p36 = scmp.eq.s32.totalorder %s35, 0
    %s38 = sadd.s32 %s37, 1
    %s39 = scalar_select %p36, %s37, %s38
    %p42 = pneg %p36
    %p43 = scmp.eq.s32.totalorder %s13, 1
    %p44 = por %p42, %p43
    %p45 = scmp.ne.s32.totalorder %s37, %s40
    %p46 = scmp.eq.s32.totalorder %s13, 0
    %p47 = por %p45, %p46
    %p48 = scmp.ne.s32.totalorder %s37, %s40
    %p49 = scmp.eq.s32.totalorder %s18, 1
    %p50 = por %p48, %p49
    %p51 = scmp.ne.s32.totalorder %s40, %s41
    %p52 = scmp.eq.s32.totalorder %s18, 0
    %p53 = por %p51, %p52
    %p54 = scmp.ne.s32.totalorder %s40, %s41
    %p55 = scmp.eq.s32.totalorder %s19, 1
    %p56 = por %p54, %p55
    %p58 = scmp.ne.s32.totalorder %s41, %s57
    %p59 = scmp.eq.s32.totalorder %s19, 0
    %p60 = por %p58, %p59
    %s61 = ssub.s32 %s20, %s32
    %s62 = ssub.s32 %s21, %s28
    %s63 = sor.u32 %s61, %s62
    %p64 = scmp.eq.s32.totalorder %s63, 0
    %s66 = sadd.s32 %s65, 1
    %s67 = scalar_select %p64, %s65, %s66
    %p70 = pneg %p64
    %p71 = scmp.eq.s32.totalorder %s13, 1
    %p72 = por %p70, %p71
    %p73 = scmp.ne.s32.totalorder %s65, %s68
    %p74 = scmp.eq.s32.totalorder %s13, 0
    %p75 = por %p73, %p74
    %p76 = scmp.ne.s32.totalorder %s65, %s68
    %p77 = scmp.eq.s32.totalorder %s18, 1
    %p78 = por %p76, %p77
    %p79 = scmp.ne.s32.totalorder %s68, %s69
    %p80 = scmp.eq.s32.totalorder %s18, 0
    %p81 = por %p79, %p80
    %p82 = scmp.ne.s32.totalorder %s68, %s69
    %p83 = scmp.eq.s32.totalorder %s19, 1
    %p84 = por %p82, %p83
    %p86 = scmp.ne.s32.totalorder %s69, %s85
    %p87 = scmp.eq.s32.totalorder %s19, 0
    %p88 = por %p86, %p87
    %s89 = ssub.s32 %s20, %s32
    %s90 = ssub.s32 %s21, %s28
    %s91 = sor.u32 %s89, %s90
    %p92 = scmp.eq.s32.totalorder %s91, 0
    %s94 = sadd.s32 %s93, 1
    %s95 = scalar_select %p92, %s93, %s94
    %p98 = pneg %p92
    %p99 = scmp.eq.s32.totalorder %s13, 1
    %p100 = por %p98, %p99
    %p101 = scmp.ne.s32.totalorder %s93, %s96
    %p102 = scmp.eq.s32.totalorder %s13, 0
    %p103 = por %p101, %p102
    %p104 = scmp.ne.s32.totalorder %s93, %s96
    %p105 = scmp.eq.s32.totalorder %s18, 1
    %p106 = por %p104, %p105
    %p107 = scmp.ne.s32.totalorder %s96, %s97
    %p108 = scmp.eq.s32.totalorder %s18, 0
    %p109 = por %p107, %p108
    %p110 = scmp.ne.s32.totalorder %s96, %s97
    %p111 = scmp.eq.s32.totalorder %s19, 1
    %p112 = por %p110, %p111
    %p114 = scmp.ne.s32.totalorder %s97, %s113
    %p115 = scmp.eq.s32.totalorder %s19, 0
    %p116 = por %p114, %p115
    %s118 = sadd.s32 %s117, 1
    %p121 = scmp.eq.s32.totalorder %s13, 1
    %p122 = scmp.ne.s32.totalorder %s117, %s119
    %p123 = scmp.eq.s32.totalorder %s13, 0
    %p124 = por %p122, %p123
    %p125 = scmp.ne.s32.totalorder %s117, %s119
    %p126 = scmp.eq.s32.totalorder %s18, 1
    %p127 = por %p125, %p126
    %p128 = scmp.ne.s32.totalorder %s119, %s120
    %p129 = scmp.eq.s32.totalorder %s18, 0
    %p130 = por %p128, %p129
    %p131 = scmp.ne.s32.totalorder %s119, %s120
    %p132 = scmp.eq.s32.totalorder %s19, 1
    %p133 = por %p131, %p132
    %p135 = scmp.ne.s32.totalorder %s120, %s134
    %p136 = scmp.eq.s32.totalorder %s19, 0
    %p137 = por %p135, %p136
    %s138 = ssub.s32 %s20, %s32
    %p139 = scmp.eq.s32.totalorder %s138, 0
    %s141 = sadd.s32 %s140, 1
    %s142 = scalar_select %p139, %s140, %s141
    %p145 = pneg %p139
    %p146 = scmp.eq.s32.totalorder %s13, 1
    %p147 = por %p145, %p146
    %p148 = scmp.ne.s32.totalorder %s140, %s143
    %p149 = scmp.eq.s32.totalorder %s13, 0
    %p150 = por %p148, %p149
    %p151 = scmp.ne.s32.totalorder %s140, %s143
    %p152 = scmp.eq.s32.totalorder %s18, 1
    %p153 = por %p151, %p152
    %p154 = scmp.ne.s32.totalorder %s143, %s144
    %p155 = scmp.eq.s32.totalorder %s18, 0
    %p156 = por %p154, %p155
    %p157 = scmp.ne.s32.totalorder %s143, %s144
    %p158 = scmp.eq.s32.totalorder %s19, 1
    %p159 = por %p157, %p158
    %p161 = scmp.ne.s32.totalorder %s144, %s160
    %p162 = scmp.eq.s32.totalorder %s19, 0
    %p163 = por %p161, %p162
    %s164 = ssub.s32 %s20, %s32
    %p165 = scmp.eq.s32.totalorder %s164, 0
    %s167 = sadd.s32 %s166, 1
    %s168 = scalar_select %p165, %s166, %s167
    %p171 = pneg %p165
    %p172 = scmp.eq.s32.totalorder %s13, 1
    %p173 = por %p171, %p172
    %p174 = scmp.ne.s32.totalorder %s166, %s169
    %p175 = scmp.eq.s32.totalorder %s13, 0
    %p176 = por %p174, %p175
    %p177 = scmp.ne.s32.totalorder %s166, %s169
    %p178 = scmp.eq.s32.totalorder %s18, 1
    %p179 = por %p177, %p178
    %p180 = scmp.ne.s32.totalorder %s169, %s170
    %p181 = scmp.eq.s32.totalorder %s18, 0
    %p182 = por %p180, %p181
    %p183 = scmp.ne.s32.totalorder %s169, %s170
    %p184 = scmp.eq.s32.totalorder %s19, 1
    %p185 = por %p183, %p184
    %p187 = scmp.ne.s32.totalorder %s170, %s186
    %p188 = scmp.eq.s32.totalorder %s19, 0
    %p189 = por %p187, %p188
    %s190 = ssub.s32 %s20, %s32
    %p191 = scmp.eq.s32.totalorder %s190, 0
    %s193 = sadd.s32 %s192, 1
    %s194 = scalar_select %p191, %s192, %s193
    %p197 = pneg %p191
    %p198 = scmp.eq.s32.totalorder %s13, 1
    %p199 = por %p197, %p198
    %p200 = scmp.ne.s32.totalorder %s192, %s195
    %p201 = scmp.eq.s32.totalorder %s13, 0
    %p202 = por %p200, %p201
    %p203 = scmp.ne.s32.totalorder %s192, %s195
    %p204 = scmp.eq.s32.totalorder %s18, 1
    %p205 = por %p203, %p204
    %p206 = scmp.ne.s32.totalorder %s195, %s196
    %p207 = scmp.eq.s32.totalorder %s18, 0
    %p208 = por %p206, %p207
    %p209 = scmp.ne.s32.totalorder %s195, %s196
    %p210 = scmp.eq.s32.totalorder %s19, 1
    %p211 = por %p209, %p210
    %p213 = scmp.ne.s32.totalorder %s196, %s212
    %p214 = scmp.eq.s32.totalorder %s19, 0
    %p215 = por %p213, %p214
    %p216 = scmp.le.s32.totalorder 1, %s13
    %p217 = scmp.lt.s32.totalorder %s13, 3
    %p218 = pnand %p216, %p217
    %p219 = pneg %p218
    // Predicated region
    $region9: #{tpu_custom_call.1} parent=5 // pred_check
      _
    $region10: #{tpu_custom_call.1} parent=5 // pred_check_branch
      %221 = sbr.rel (%p218) target = $region12
    $region11: #{tpu_custom_call.1} parent=5 // pred_region
      %s222 = ssub.s32 %s13, 1
      // Predicated region
      $region13: #{tpu_custom_call.1} parent=11 // pred_check
        %p223 = pneg %p130
      $region14: #{tpu_custom_call.1} parent=11 // pred_check_branch
        %225 = sbr.rel (%p223) target = $region16
      $region15: #{tpu_custom_call.1} parent=11 // pred_region
        _
      $region16: #{tpu_custom_call.1} parent=11 // pred_fallthru
        _
    $region12: #{tpu_custom_call.1} parent=5 // pred_fallthru
      _
    %p226 = scmp.lt.s32.totalorder %s13, 2
    // Predicated region
    $region17: #{tpu_custom_call.1} parent=5 // pred_check
      %p227 = pneg %p226
    $region18: #{tpu_custom_call.1} parent=5 // pred_check_branch
      %229 = sbr.rel (%p227) target = $region20
    $region19: #{tpu_custom_call.1} parent=5 // pred_region
      // Predicated region
      $region21: #{tpu_custom_call.1} parent=19 // pred_check
        %p230 = pneg %p47
      $region22: #{tpu_custom_call.1} parent=19 // pred_check_branch
        %232 = sbr.rel (%p230) target = $region24
      $region23: #{tpu_custom_call.1} parent=19 // pred_region
        %s233 = smul.u32 4, %s21
        %p234 = scmp.lt.s32.totalorder %s20, 1
        %s235 = scalar_select %p234, %s20, 1
        %p236 = scmp.lt.s32.totalorder %s233, 3
        %s237 = scalar_select %p236, %s233, 3
        %s238 = smul.addr %s235, 8
        %s239 = sadd.s32 %s237, %s238
        %s240 = smul.addr %s239, 8
        %s241 = scalar_lea.vmem %s0, %s240
        %s242 = smul.u32 4, %s21
      $region24: #{tpu_custom_call.1} parent=19 // pred_fallthru
        _
      // Predicated region
      $region25: #{tpu_custom_call.1} parent=19 // pred_check
        %p243 = pneg %p75
      $region26: #{tpu_custom_call.1} parent=19 // pred_check_branch
        %245 = sbr.rel (%p243) target = $region28
      $region27: #{tpu_custom_call.1} parent=19 // pred_region
        %s246 = smul.u32 4, %s21
        %p247 = scmp.lt.s32.totalorder %s20, 1
        %s248 = scalar_select %p247, %s20, 1
        %p249 = scmp.lt.s32.totalorder %s246, 3
        %s250 = scalar_select %p249, %s246, 3
        %s251 = smul.addr %s248, 4
        %s252 = sadd.s32 %s250, %s251
        %s253 = scalar_lea.vmem %s1, %s252
        %s254 = smul.u32 4, %s21
      $region28: #{tpu_custom_call.1} parent=19 // pred_fallthru
        _
      // Predicated region
      $region29: #{tpu_custom_call.1} parent=19 // pred_check
        %p255 = pneg %p103
      $region30: #{tpu_custom_call.1} parent=19 // pred_check_branch
        %257 = sbr.rel (%p255) target = $region32
      $region31: #{tpu_custom_call.1} parent=19 // pred_region
        %s258 = smul.u32 4, %s21
        %p259 = scmp.lt.s32.totalorder %s20, 1
        %s260 = scalar_select %p259, %s20, 1
        %p261 = scmp.lt.s32.totalorder %s258, 3
        %s262 = scalar_select %p261, %s258, 3
        %s263 = smul.addr %s260, 4
        %s264 = sadd.s32 %s262, %s263
        %s265 = scalar_lea.vmem %s2, %s264
        %s266 = smul.u32 4, %s21
      $region32: #{tpu_custom_call.1} parent=19 // pred_fallthru
        _
    $region20: #{tpu_custom_call.1} parent=5 // pred_fallthru
      _
    %p267 = scmp.le.s32.totalorder 1, %s13
    %p268 = scmp.lt.s32.totalorder %s13, 3
    %p269 = pnand %p267, %p268
    %p270 = pneg %p269
    // Predicated region
    $region33: #{tpu_custom_call.1} parent=5 // pred_check
      _
    $region34: #{tpu_custom_call.1} parent=5 // pred_check_branch
      %272 = sbr.rel (%p269) target = $region36
    $region35: #{tpu_custom_call.1} parent=5 // pred_region
      %s273 = ssub.s32 %s13, 1
      %s274 = smul.u32 4, %s23
      %p275 = scmp.lt.s32.totalorder %s22, 1
      %s276 = scalar_select %p275, %s22, 1
      %p277 = scmp.lt.s32.totalorder %s274, 3
      %s278 = scalar_select %p277, %s274, 3
      %s279 = smul.addr %s276, 8
      %s280 = sadd.s32 %s278, %s279
      %s281 = smul.addr %s280, 8
      %s282 = scalar_lea.vmem %s0, %s281
      %p283 = pneg %p53
      %p284 = pneg %p50
      %s285 = smul.u32 4, %s23
      %p286 = scmp.lt.s32.totalorder %s22, 1
      %s287 = scalar_select %p286, %s22, 1
      %p288 = scmp.lt.s32.totalorder %s285, 3
      %s289 = scalar_select %p288, %s285, 3
      %s290 = smul.addr %s287, 4
      %s291 = sadd.s32 %s289, %s290
      %s292 = scalar_lea.vmem %s1, %s291
      %p293 = pneg %p81
      %p294 = pneg %p78
      %s295 = smul.u32 4, %s23
      %p296 = scmp.lt.s32.totalorder %s22, 1
      %s297 = scalar_select %p296, %s22, 1
      %p298 = scmp.lt.s32.totalorder %s295, 3
      %s299 = scalar_select %p298, %s295, 3
      %s300 = smul.addr %s297, 4
      %s301 = sadd.s32 %s299, %s300
      %s302 = scalar_lea.vmem %s2, %s301
      %p303 = pneg %p109
      %p304 = pneg %p106
      %p305 = pneg %p130
      %p306 = pneg %p127
      %p307 = pneg %p156
      %p308 = pneg %p153
      %p309 = scmp.lt.s32.totalorder %s22, 1
      %s310 = scalar_select %p309, %s22, 1
      %s311 = scalar_lea.vmem %s4, %s310
      %p312 = pneg %p182
      %p313 = pneg %p179
      %p314 = scmp.lt.s32.totalorder %s22, 1
      %s315 = scalar_select %p314, %s22, 1
      %s316 = scalar_lea.vmem %s5, %s315
      %p317 = pneg %p208
      %p318 = pneg %p205
      %p319 = scmp.lt.s32.totalorder %s22, 1
      %s320 = scalar_select %p319, %s22, 1
      %s321 = scalar_lea.vmem %s6, %s320
      %s322 = smul.u32 4, %s23
      %p323 = scmp.lt.s32.totalorder %s22, 1
      %s324 = scalar_select %p323, %s22, 1
      %p325 = scmp.lt.s32.totalorder %s322, 3
      %s326 = scalar_select %p325, %s322, 3
      %s327 = smul.addr %s324, 8
      %s328 = sadd.s32 %s326, %s327
      %s329 = smul.addr %s328, 8
      %s330 = scalar_lea.vmem %s0, %s329
      %s331 = smul.u32 4, %s23
      %s332 = smul.u32 4, %s23
      %p333 = scmp.lt.s32.totalorder %s22, 1
      %s334 = scalar_select %p333, %s22, 1
      %p335 = scmp.lt.s32.totalorder %s332, 3
      %s336 = scalar_select %p335, %s332, 3
      %s337 = smul.addr %s334, 4
      %s338 = sadd.s32 %s336, %s337
      %s339 = scalar_lea.vmem %s1, %s338
      %s340 = smul.u32 4, %s23
      %s341 = smul.u32 4, %s23
      %p342 = scmp.lt.s32.totalorder %s22, 1
      %s343 = scalar_select %p342, %s22, 1
      %p344 = scmp.lt.s32.totalorder %s341, 3
      %s345 = scalar_select %p344, %s341, 3
      %s346 = smul.addr %s343, 4
      %s347 = sadd.s32 %s345, %s346
      %s348 = scalar_lea.vmem %s2, %s347
      %s349 = smul.u32 4, %s23
      %p350 = scmp.lt.s32.totalorder %s22, 1
      %s351 = scalar_select %p350, %s22, 1
      %s352 = scalar_lea.vmem %s4, %s351
      %p353 = scmp.lt.s32.totalorder %s22, 1
      %s354 = scalar_select %p353, %s22, 1
      %s355 = scalar_lea.vmem %s5, %s354
      %p356 = scmp.lt.s32.totalorder %s22, 1
      %s357 = scalar_select %p356, %s22, 1
      %s358 = scalar_lea.vmem %s6, %s357
      %p359 = scmp.eq.s32.totalorder %s23, 0
      // Predicated region
      $region37: #{tpu_custom_call.1} parent=35 // pred_check
        %p360 = pneg %p359
      $region38: #{tpu_custom_call.1} parent=35 // pred_check_branch
        %362 = sbr.rel (%p360) target = $region40
      $region39: #{tpu_custom_call.1} parent=35 // pred_region
        %v363 = vlaneseq
        %vm364 = vcmp.ge.s32.totalorder %v363, 0
        %vm365 = vcmp.lt.s32.totalorder %v363, 512
        %vm366 = vmand %vm364, %vm365
        %367 = vst.msk [vmem:[#allocation2] sm:$0xf] %vm366, 0.0
        %368 = vst.msk [vmem:[#allocation3] sm:$0xf] %vm366, 0.0
      $region40: #{tpu_custom_call.1} parent=35 // pred_fallthru
        _
      %v369 = vld [vmem:[%s330] sm:$0xff]
      %v370 = vld [vmem:[%s330 + $0x8] sm:$0xff]
      %v371 = vld [vmem:[%s330 + $0x10] sm:$0xff]
      %v372 = vld [vmem:[%s330 + $0x18] sm:$0xff]
      %v373 = vld [vmem:[%s330 + $0x20] sm:$0x1]
      %v374 = vld [vmem:[%s330 + $0x28] sm:$0x1]
      %v375 = vld [vmem:[%s330 + $0x30] sm:$0x1]
      %v376 = vld [vmem:[%s330 + $0x38] sm:$0x1]
      %v377 = vld [vmem:[%s339] sm:$0xf]
      %v378 = vld [vmem:[%s348] sm:$0xf]
      %vm379 = vcmask 1040384
      %v380 = vsel %vm379, %v373, -inf
      %v381 = vmax.f32 %v369, %v380
      %v382 = vrot.slane %v381, 4
      %v383 = vmax.f32 %v381, %v382
      %v384 = vrot.slane %v383, 2
      %v385 = vmax.f32 %v383, %v384
      %v386 = vrot.slane %v385, 1
      %v387 = vmax.f32 %v385, %v386
      %v388 = vsel %vm379, %v374, -inf
      %v389 = vmax.f32 %v370, %v388
      %v390 = vrot.slane %v389, 4
      %v391 = vmax.f32 %v389, %v390
      %v392 = vrot.slane %v391, 2
      %v393 = vmax.f32 %v391, %v392
      %v394 = vrot.slane %v393, 1
      %v395 = vmax.f32 %v393, %v394
      %v396 = vsel %vm379, %v375, -inf
      %v397 = vmax.f32 %v371, %v396
      %v398 = vrot.slane %v397, 4
      %v399 = vmax.f32 %v397, %v398
      %v400 = vrot.slane %v399, 2
      %v401 = vmax.f32 %v399, %v400
      %v402 = vrot.slane %v401, 1
      %v403 = vmax.f32 %v401, %v402
      %v404 = vsel %vm379, %v376, -inf
      %v405 = vmax.f32 %v372, %v404
      %v406 = vrot.slane %v405, 4
      %v407 = vmax.f32 %v405, %v406
      %v408 = vrot.slane %v407, 2
      %v409 = vmax.f32 %v407, %v408
      %v410 = vrot.slane %v409, 1
      %v411 = vmax.f32 %v409, %v410
      %v412 = vsub.f32 %v369, %v387
      %v413 = vsub.f32 %v370, %v395
      %v414 = vsub.f32 %v371, %v403
      %v415 = vsub.f32 %v372, %v411
      %v416 = vsub.f32 %v373, %v387
      %v417 = vsub.f32 %v374, %v395
      %v418 = vsub.f32 %v375, %v403
      %v419 = vsub.f32 %v376, %v411
      %v420 = vmul.f32 %v412, 1.442695
      %v421 = vpow.pop %v420
      %v422 = vmul.f32 %v413, 1.442695
      %v423 = vpow.pop %v422
      %v424 = vmul.f32 %v414, 1.442695
      %v425 = vpow.pop %v424
      %v426 = vmul.f32 %v415, 1.442695
      %v427 = vpow.pop %v426
      %v428 = vmul.f32 %v416, 1.442695
      %v429 = vpow.pop %v428
      %v430 = vmul.f32 %v417, 1.442695
      %v431 = vpow.pop %v430
      %v432 = vmul.f32 %v418, 1.442695
      %v433 = vpow.pop %v432
      %v434 = vmul.f32 %v419, 1.442695
      %v435 = vpow.pop %v434
      %v436 = vsel %vm379, %v429, 0.0
      %v437 = vadd.f32 %v421, %v436
      %v438 = vrot.slane %v437, 4
      %v439 = vadd.f32 %v437, %v438
      %v440 = vrot.slane %v439, 2
      %v441 = vadd.f32 %v439, %v440
      %v442 = vrot.slane %v441, 1
      %v443 = vadd.f32 %v441, %v442
      %v444 = vsel %vm379, %v431, 0.0
      %v445 = vadd.f32 %v423, %v444
      %v446 = vrot.slane %v445, 4
      %v447 = vadd.f32 %v445, %v446
      %v448 = vrot.slane %v447, 2
      %v449 = vadd.f32 %v447, %v448
      %v450 = vrot.slane %v449, 1
      %v451 = vadd.f32 %v449, %v450
      %v452 = vsel %vm379, %v433, 0.0
      %v453 = vadd.f32 %v425, %v452
      %v454 = vrot.slane %v453, 4
      %v455 = vadd.f32 %v453, %v454
      %v456 = vrot.slane %v455, 2
      %v457 = vadd.f32 %v455, %v456
      %v458 = vrot.slane %v457, 1
      %v459 = vadd.f32 %v457, %v458
      %v460 = vsel %vm379, %v435, 0.0
      %v461 = vadd.f32 %v427, %v460
      %v462 = vrot.slane %v461, 4
      %v463 = vadd.f32 %v461, %v462
      %v464 = vrot.slane %v463, 2
      %v465 = vadd.f32 %v463, %v464
      %v466 = vrot.slane %v465, 1
      %v467 = vadd.f32 %v465, %v466
      %v468 = vlog2.pop %v443
      %v469 = vmul.f32 %v468, 0.6931472
      %v470 = vlog2.pop %v451
      %v471 = vmul.f32 %v470, 0.6931472
      %v472 = vlog2.pop %v459
      %v473 = vmul.f32 %v472, 0.6931472
      %v474 = vlog2.pop %v467
      %v475 = vmul.f32 %v474, 0.6931472
      %v476 = vadd.f32 %v469, %v387
      %v477 = vadd.f32 %v471, %v395
      %v478 = vadd.f32 %v473, %v403
      %v479 = vadd.f32 %v475, %v411
      %v480 = vlaneseq
      %v481 = vshrl.u32 %v480, 7
      %v482 = vadd.s32 %v481, 8
      %v483 = vlaneseq
      %v484 = vshrl.u32 %v483, 7
      %v485 = vsub.s32 0, %v484
      %v486 = vrot.slane %v377, %v485
      %v487 = vlaneseq
      %v488 = vshrl.u32 %v487, 7
      %v489 = vsub.s32 1, %v488
      %v490 = vrot.slane %v377, %v489
      %v491 = vlaneseq
      %v492 = vshrl.u32 %v491, 7
      %v493 = vsub.s32 2, %v492
      %v494 = vrot.slane %v377, %v493
      %v495 = vlaneseq
      %v496 = vshrl.u32 %v495, 7
      %v497 = vsub.s32 3, %v496
      %v498 = vrot.slane %v377, %v497
      %vm499 = vcmp.eq.s32.totalorder %v481, %v486
      %vm500 = vcmp.eq.s32.totalorder %v481, %v490
      %vm501 = vcmp.eq.s32.totalorder %v481, %v494
      %vm502 = vcmp.eq.s32.totalorder %v481, %v498
      %vm503 = vcmp.eq.s32.totalorder %v482, %v486
      %vm504 = vcmp.eq.s32.totalorder %v482, %v490
      %vm505 = vcmp.eq.s32.totalorder %v482, %v494
      %vm506 = vcmp.eq.s32.totalorder %v482, %v498
      %v507 = vsel %vm499, %v369, 0.0
      %v508 = vsel %vm500, %v370, 0.0
      %v509 = vsel %vm501, %v371, 0.0
      %v510 = vsel %vm502, %v372, 0.0
      %v511 = vsel %vm503, %v373, 0.0
      %v512 = vsel %vm504, %v374, 0.0
      %v513 = vsel %vm505, %v375, 0.0
      %v514 = vsel %vm506, %v376, 0.0
      %v515 = vsel %vm379, %v511, 0.0
      %v516 = vadd.f32 %v507, %v515
      %v517 = vrot.slane %v516, 4
      %v518 = vadd.f32 %v516, %v517
      %v519 = vrot.slane %v518, 2
      %v520 = vadd.f32 %v518, %v519
      %v521 = vrot.slane %v520, 1
      %v522 = vadd.f32 %v520, %v521
      %v523 = vsel %vm379, %v512, 0.0
      %v524 = vadd.f32 %v508, %v523
      %v525 = vrot.slane %v524, 4
      %v526 = vadd.f32 %v524, %v525
      %v527 = vrot.slane %v526, 2
      %v528 = vadd.f32 %v526, %v527
      %v529 = vrot.slane %v528, 1
      %v530 = vadd.f32 %v528, %v529
      %v531 = vsel %vm379, %v513, 0.0
      %v532 = vadd.f32 %v509, %v531
      %v533 = vrot.slane %v532, 4
      %v534 = vadd.f32 %v532, %v533
      %v535 = vrot.slane %v534, 2
      %v536 = vadd.f32 %v534, %v535
      %v537 = vrot.slane %v536, 1
      %v538 = vadd.f32 %v536, %v537
      %v539 = vsel %vm379, %v514, 0.0
      %v540 = vadd.f32 %v510, %v539
      %v541 = vrot.slane %v540, 4
      %v542 = vadd.f32 %v540, %v541
      %v543 = vrot.slane %v542, 2
      %v544 = vadd.f32 %v542, %v543
      %v545 = vrot.slane %v544, 1
      %v546 = vadd.f32 %v544, %v545
      %v547 = vsub.f32 %v476, %v522
      %v548 = vsub.f32 %v477, %v530
      %v549 = vsub.f32 %v478, %v538
      %v550 = vsub.f32 %v479, %v546
      %v551 = vld [vmem:[#allocation2] sm:$0xf]
      %v553 = vlaneseq
      %v554 = vshrl.u32 %v553, 7
      %v555 = vsub.s32 0, %v554
      %v556 = vrot.slane %v378, %v555
      %v557 = vlaneseq
      %v558 = vshrl.u32 %v557, 7
      %v559 = vsub.s32 1, %v558
      %v560 = vrot.slane %v378, %v559
      %v561 = vlaneseq
      %v562 = vshrl.u32 %v561, 7
      %v563 = vsub.s32 2, %v562
      %v564 = vrot.slane %v378, %v563
      %v565 = vlaneseq
      %v566 = vshrl.u32 %v565, 7
      %v567 = vsub.s32 3, %v566
      %v568 = vrot.slane %v378, %v567
      %v573 = vmul.f32 %v547, %v556
      %v574 = vmul.f32 %v548, %v560
      %v575 = vmul.f32 %v549, %v564
      %v576 = vmul.f32 %v550, %v568
      %v581 = vcombine.low %v573, %v574
      %v582 = vcombine.low %v575, %v576
      %v584 = vunpack.c.l.s4 1966171168
      %v585 = vunpack.c.0.s8 %v584
      %v586 = vlaneseq
      %v587 = vshrl.u32 %v586, 7
      %v588 = vsub.s32 %v585, %v587
      %v589 = vrot.slane %v581, %v588
      %v591 = vunpack.c.l.s4 1966171168
      %v592 = vunpack.c.0.s8 %v591
      %v593 = vlaneseq
      %v594 = vshrl.u32 %v593, 7
      %v595 = vsub.s32 %v592, %v594
      %v596 = vrot.slane %v582, %v595
      %v597 = vcombine.low %v589, %v596
      %v599 = vunpack.c.l.s4 1966171168
      %v600 = vunpack.c.0.s8 %v599
      %v601 = vlaneseq
      %v602 = vshrl.u32 %v601, 7
      %v603 = vsub.s32 %v600, %v602
      %v604 = vrot.slane %v597, %v603
      %v606 = vadd.f32 %v551, %v604
      %v607 = vlaneseq
      %vm608 = vcmp.ge.s32.totalorder %v607, 0
      %vm609 = vcmp.lt.s32.totalorder %v607, 512
      %vm610 = vmand %vm608, %vm609
      %611 = vst.msk [vmem:[#allocation2] sm:$0xf] %vm610, %v606
      %v612 = vld [vmem:[#allocation3] sm:$0xf]
      %v613 = vadd.f32 %v612, %v378
      %614 = vst.msk [vmem:[#allocation3] sm:$0xf] %vm610, %v613
      // Predicated region
      $region41: #{tpu_custom_call.1} parent=35 // pred_check
        %p615 = pneg %p359
      $region42: #{tpu_custom_call.1} parent=35 // pred_check_branch
        %617 = sbr.rel (%p615) target = $region44
      $region43: #{tpu_custom_call.1} parent=35 // pred_region
        %v618 = vld [vmem:[#allocation2] sm:$0xf]
        %v620 = vlaneseq
        %v621 = vshrl.u32 %v620, 7
        %v622 = vsub.s32 0, %v621
        %v623 = vrot.slane %v618, %v622
        %v624 = vlaneseq
        %v625 = vshrl.u32 %v624, 7
        %v626 = vsub.s32 1, %v625
        %v627 = vrot.slane %v618, %v626
        %v628 = vlaneseq
        %v629 = vshrl.u32 %v628, 7
        %v630 = vsub.s32 2, %v629
        %v631 = vrot.slane %v618, %v630
        %v632 = vlaneseq
        %v633 = vshrl.u32 %v632, 7
        %v634 = vsub.s32 3, %v633
        %v635 = vrot.slane %v618, %v634
        %v640 = vsel %vm379, %v623, 0.0
        %v641 = vsel %vm379, %v627, 0.0
        %v642 = vadd.f32 %v640, %v641
        %v643 = vsel %vm379, %v631, 0.0
        %v644 = vadd.f32 %v642, %v643
        %v645 = vsel %vm379, %v635, 0.0
        %v646 = vadd.f32 %v644, %v645
        %647 = vadd.xlane.f32.xlu0 %v646
        %v648 = vpop.xlane.xlu0 %647
        %v649 = vrot.slane %v648, 4
        %v650 = vadd.f32 %v648, %v649
        %v651 = vrot.slane %v650, 2
        %v652 = vadd.f32 %v650, %v651
        %v653 = vrot.slane %v652, 1
        %v654 = vadd.f32 %v652, %v653
        %s655 = vtos %v654
        %v656 = vstv %s655
        %vm657 = vcmask 0
        %658 = vst.msk [vmem:[%s352] sm:$0x1] %vm657, %v656
        %v659 = vld [vmem:[#allocation3] sm:$0xf]
        %v661 = vlaneseq
        %v662 = vshrl.u32 %v661, 7
        %v663 = vsub.s32 0, %v662
        %v664 = vrot.slane %v659, %v663
        %v665 = vlaneseq
        %v666 = vshrl.u32 %v665, 7
        %v667 = vsub.s32 1, %v666
        %v668 = vrot.slane %v659, %v667
        %v669 = vlaneseq
        %v670 = vshrl.u32 %v669, 7
        %v671 = vsub.s32 2, %v670
        %v672 = vrot.slane %v659, %v671
        %v673 = vlaneseq
        %v674 = vshrl.u32 %v673, 7
        %v675 = vsub.s32 3, %v674
        %v676 = vrot.slane %v659, %v675
        %v681 = vsel %vm379, %v664, 0.0
        %v682 = vsel %vm379, %v668, 0.0
        %v683 = vadd.f32 %v681, %v682
        %v684 = vsel %vm379, %v672, 0.0
        %v685 = vadd.f32 %v683, %v684
        %v686 = vsel %vm379, %v676, 0.0
        %v687 = vadd.f32 %v685, %v686
        %688 = vadd.xlane.f32.xlu0 %v687
        %v689 = vpop.xlane.xlu0 %688
        %v690 = vrot.slane %v689, 4
        %v691 = vadd.f32 %v689, %v690
        %v692 = vrot.slane %v691, 2
        %v693 = vadd.f32 %v691, %v692
        %v694 = vrot.slane %v693, 1
        %v695 = vadd.f32 %v693, %v694
        %s696 = vtos %v695
        %v697 = vstv %s696
        %698 = vst.msk [vmem:[%s355] sm:$0x1] %vm657, %v697
        %v699 = vld [vmem:[%s3] sm:$0xff]
        %v700 = vld [vmem:[%s3 + $0x8] sm:$0xff]
        %v701 = vmul.f32 %v699, %v699
        %v702 = vmul.f32 %v700, %v700
        %vm703 = vcmask 261120
        %v704 = vsel %vm703, %v701, 0.0
        %705 = vadd.xlane.f32.xlu0 %v704
        %v706 = vpop.xlane.xlu0 %705
        %v707 = vsel %vm703, %v702, 0.0
        %708 = vadd.xlane.f32.xlu0 %v707
        %v709 = vpop.xlane.xlu0 %708
        %v710 = vmax.f32 %v706, 1e-24
        %v711 = vmax.f32 %v709, 1e-24
        %v712 = vrsqrt.pop %v710
        %v713 = vrsqrt.pop %v711
        %v714 = vmul.f32 %v699, %v712
        %v715 = vmul.f32 %v700, %v713
        %v717 = vsel %vm703, %v714, 0
        %v720 = vsel %vm703, %v715, 0
        %722 = vmatprep.subr.mxu0 0.0
        %723 = vmatpush1.xpose.msra.mxu0 %v717
        %724 = vmatprep.subr.mxu0 0.0
        %725 = vmatpush1.xpose.msra.mxu0 %v720
        %726 = vmatprep.subr.mxu0 0.0
        %727 = vmatpush1.xpose.msra.mxu0 0.0
        %728 = vmatprep.subr.mxu0 0.0
        %729 = vmatpush1.xpose.msra.mxu0 0.0
        %730 = vmatprep.subr.mxu0 0.0
        %731 = vmatpush1.xpose.msra.mxu0 0.0
        %732 = vmatprep.subr.mxu0 0.0
        %733 = vmatpush1.xpose.msra.mxu0 0.0
        %734 = vmatprep.subr.mxu0 0.0
        %735 = vmatpush1.xpose.msra.mxu0 0.0
        %736 = vmatprep.subr.mxu0 0.0
        %737 = vmatpush1.xpose.msra.mxu0 0.0
        %738 = vmatprep.subr.mxu0 0.0
        %739 = vmatpush1.xpose.msra.mxu0 0.0
        %740 = vmatprep.subr.mxu0 0.0
        %741 = vmatpush1.xpose.msra.mxu0 0.0
        %742 = vmatprep.subr.mxu0 0.0
        %743 = vmatpush1.xpose.msra.mxu0 0.0
        %744 = vmatprep.subr.mxu0 0.0
        %745 = vmatpush1.xpose.msra.mxu0 0.0
        %746 = vmatprep.subr.mxu0 0.0
        %747 = vmatpush1.xpose.msra.mxu0 0.0
        %748 = vmatprep.subr.mxu0 0.0
        %749 = vmatpush1.xpose.msra.mxu0 0.0
        %750 = vmatprep.subr.mxu0 0.0
        %751 = vmatpush1.xpose.msra.mxu0 0.0
        %752 = vmatprep.subr.mxu0 0.0
        %753 = vmatpush1.xpose.msra.mxu0 0.0
        %754 = vmatprep.subr.mxu0 0.0
        %755 = vmatpush1.xpose.msra.mxu0 0.0
        %756 = vmatprep.subr.mxu0 0.0
        %757 = vmatpush1.xpose.msra.mxu0 0.0
        %758 = vmatprep.subr.mxu0 0.0
        %759 = vmatpush1.xpose.msra.mxu0 0.0
        %760 = vmatprep.subr.mxu0 0.0
        %761 = vmatpush1.xpose.msra.mxu0 0.0
        %762 = vmatprep.subr.mxu0 0.0
        %763 = vmatpush1.xpose.msra.mxu0 0.0
        %764 = vmatprep.subr.mxu0 0.0
        %765 = vmatpush1.xpose.msra.mxu0 0.0
        %766 = vmatprep.subr.mxu0 0.0
        %767 = vmatpush1.xpose.msra.mxu0 0.0
        %768 = vmatprep.subr.mxu0 0.0
        %769 = vmatpush1.xpose.msra.mxu0 0.0
        %770 = vmatprep.subr.mxu0 0.0
        %771 = vmatpush1.xpose.msra.mxu0 0.0
        %772 = vmatprep.subr.mxu0 0.0
        %773 = vmatpush1.xpose.msra.mxu0 0.0
        %774 = vmatprep.subr.mxu0 0.0
        %775 = vmatpush1.xpose.msra.mxu0 0.0
        %776 = vmatprep.subr.mxu0 0.0
        %777 = vmatpush1.xpose.msra.mxu0 0.0
        %778 = vmatprep.subr.mxu0 0.0
        %779 = vmatpush1.xpose.msra.mxu0 0.0
        %780 = vmatprep.subr.mxu0 0.0
        %781 = vmatpush1.xpose.msra.mxu0 0.0
        %782 = vmatprep.subr.mxu0 0.0
        %783 = vmatpush1.xpose.msra.mxu0 0.0
        %784 = vmatprep.subr.mxu0 0.0
        %785 = vmatpush1.xpose.msra.mxu0 0.0
        %786 = vmatprep.mubr.f32.mxu0 0.0
        %787 = vmatmul.mubr.f32.gmra.mrb[0].mxu0 %v717
        %v788 = vpop.f32.mrb[0].mxu0
        %v789 = vadd.f32 1.0, %v788
        %v790 = vpop.f32.mrb[0].mxu0
        %791 = vmatprep.mubr.f32.mxu0 0.0
        %792 = vmatmul.mubr.f32.gmra.mrb[0].mxu0 %v720
        %v793 = vpop.f32.mrb[0].mxu0
        %v794 = vadd.f32 1.0, %v793
        %v795 = vpop.f32.mrb[0].mxu0
        %796 = vdwg.mxu0
        %v797 = vlaneseq
        %v798 = vand.u32 %v797, 127
        %vm799 = vcmp.gt.s32.totalorder %v798, %v481
        %vm800 = vcmp.gt.s32.totalorder %v798, %v482
        %v801 = vsel %vm799, 1, 0
        %v802 = vsel %vm800, 1, 0
        %v803 = vcvt.s32.f32 %v801
        %v804 = vcvt.s32.f32 %v802
        %v805 = vmul.f32 %v789, %v803
        %v806 = vmul.f32 %v794, %v804
        %vm807 = vcmask 130048
        %v808 = vsel %vm807, %v805, 0.0
        %v809 = vsel %vm807, %v806, 0.0
        %v810 = vadd.f32 %v808, %v809
        %811 = vadd.xlane.f32.xlu0 %v810
        %v812 = vpop.xlane.xlu0 %811
        %v813 = vrot.slane %v812, 4
        %v814 = vadd.f32 %v812, %v813
        %v815 = vrot.slane %v814, 2
        %v816 = vadd.f32 %v814, %v815
        %v817 = vrot.slane %v816, 1
        %v818 = vadd.f32 %v816, %v817
        %s819 = vtos %v818
        %v820 = vrcp.pop 120.0
        %s821 = vtos %v820
        %s822 = smul.f32 %s819, %s821
        %v823 = vstv %s822
        %824 = vst.msk [vmem:[%s358] sm:$0x1] %vm657, %v823
      $region44: #{tpu_custom_call.1} parent=35 // pred_fallthru
        _
      %p825 = scmp.lt.s32.totalorder %s22, 1
      %s826 = scalar_select %p825, %s22, 1
      %s827 = scalar_lea.vmem %s4, %s826
      %p828 = scmp.lt.s32.totalorder %s22, 1
      %s829 = scalar_select %p828, %s22, 1
      %s830 = scalar_lea.vmem %s5, %s829
      %p831 = scmp.lt.s32.totalorder %s22, 1
      %s832 = scalar_select %p831, %s22, 1
      %s833 = scalar_lea.vmem %s6, %s832
      // Predicated region
      $region45: #{tpu_custom_call.1} parent=35 // pred_check
        %p834 = pneg %p153
      $region46: #{tpu_custom_call.1} parent=35 // pred_check_branch
        %836 = sbr.rel (%p834) target = $region48
      $region47: #{tpu_custom_call.1} parent=35 // pred_region
        _
      $region48: #{tpu_custom_call.1} parent=35 // pred_fallthru
        _
      // Predicated region
      $region49: #{tpu_custom_call.1} parent=35 // pred_check
        %p837 = pneg %p179
      $region50: #{tpu_custom_call.1} parent=35 // pred_check_branch
        %839 = sbr.rel (%p837) target = $region52
      $region51: #{tpu_custom_call.1} parent=35 // pred_region
        _
      $region52: #{tpu_custom_call.1} parent=35 // pred_fallthru
        _
      // Predicated region
      $region53: #{tpu_custom_call.1} parent=35 // pred_check
        %p840 = pneg %p205
      $region54: #{tpu_custom_call.1} parent=35 // pred_check_branch
        %842 = sbr.rel (%p840) target = $region56
      $region55: #{tpu_custom_call.1} parent=35 // pred_region
        _
      $region56: #{tpu_custom_call.1} parent=35 // pred_fallthru
        _
    $region36: #{tpu_custom_call.1} parent=5 // pred_fallthru
      _
    %p843 = scmp.le.s32.totalorder 2, %s13
    // Predicated region
    $region57: #{tpu_custom_call.1} parent=5 // pred_check
      %p844 = pneg %p843
    $region58: #{tpu_custom_call.1} parent=5 // pred_check_branch
      %846 = sbr.rel (%p844) target = $region60
    $region59: #{tpu_custom_call.1} parent=5 // pred_region
      %s847 = ssub.s32 %s13, 2
      // Predicated region
      $region61: #{tpu_custom_call.1} parent=59 // pred_check
        %p848 = pneg %p159
      $region62: #{tpu_custom_call.1} parent=59 // pred_check_branch
        %850 = sbr.rel (%p848) target = $region64
      $region63: #{tpu_custom_call.1} parent=59 // pred_region
        %p851 = scmp.lt.s32.totalorder %s24, 1
        %s852 = scalar_select %p851, %s24, 1
        %s853 = scalar_lea.vmem %s4, %s852
      $region64: #{tpu_custom_call.1} parent=59 // pred_fallthru
        _
      // Predicated region
      $region65: #{tpu_custom_call.1} parent=59 // pred_check
        %p854 = pneg %p185
      $region66: #{tpu_custom_call.1} parent=59 // pred_check_branch
        %856 = sbr.rel (%p854) target = $region68
      $region67: #{tpu_custom_call.1} parent=59 // pred_region
        %p857 = scmp.lt.s32.totalorder %s24, 1
        %s858 = scalar_select %p857, %s24, 1
        %s859 = scalar_lea.vmem %s5, %s858
      $region68: #{tpu_custom_call.1} parent=59 // pred_fallthru
        _
      // Predicated region
      $region69: #{tpu_custom_call.1} parent=59 // pred_check
        %p860 = pneg %p211
      $region70: #{tpu_custom_call.1} parent=59 // pred_check_branch
        %862 = sbr.rel (%p860) target = $region72
      $region71: #{tpu_custom_call.1} parent=59 // pred_region
        %p863 = scmp.lt.s32.totalorder %s24, 1
        %s864 = scalar_select %p863, %s24, 1
        %s865 = scalar_lea.vmem %s6, %s864
      $region72: #{tpu_custom_call.1} parent=59 // pred_fallthru
        _
    $region60: #{tpu_custom_call.1} parent=5 // pred_fallthru
      _
  $region6: #{tpu_custom_call.1} parent=0 // loop_footer
    %s17 = sadd.s32 1, %s13
  $region7: #{tpu_custom_call.1} parent=0 // loop_footer_branch
    %12 = sbr.rel target = $region3
  $region8: #{tpu_custom_call.1} parent=0 // loop_exit
    _

</llo_original>
